<compile_context>
chip_gen: v5e
topology: v5e:2x2
jax: 0.10.0
libtpu: 0.0.40
codegen_flags: <defaults>
</compile_context>

<pallas_src>
import functools

import jax
import jax.numpy as jnp
from jax.experimental import pallas as pl
from jax.experimental.pallas import tpu as pltpu

_OUT_SUB, _OUT_LANE = 8, 128          # lane-dense (unmasked) output block
_TARGET_BLOCK_BYTES = 4 * 1024 * 1024  # ~4 MiB per streaming block (all chips)


def _capsule_loss_kernel(labels_ref, classes_ref, inputs_ref, recon_ref,
                         out_ref, acc_ref, *, m_p, m_n, lam, adj, inv_b,
                         d_total, td, ragged):
    k = pl.program_id(0)

    # (1) Zero the tile-shaped accumulator at the start of the sweep.
    #     (Statement order matters: zero -> accumulate -> finalize; pl.when
    #     blocks lower to sequential scf.if regions in program order.)
    @pl.when(k == 0)
    def _():
        acc_ref[...] = jnp.zeros_like(acc_ref)

    # (2) Accumulate this (B, TD) tile: pure VPU work, no per-step reduction.
    x = inputs_ref[...].astype(jnp.float32)
    r = recon_ref[...].astype(jnp.float32)
    diff = r - x
    sq = diff * diff
    if ragged:  # static: only traced when the last tile is partially OOB
        col = jax.lax.broadcasted_iota(jnp.int32, sq.shape, 1) + k * td
        sq = jnp.where(col < d_total, sq, 0.0)
    acc_ref[...] += sq

    # (3) Finalize once: single XLU reduction, margin on the tiny resident
    #     (B, num_classes) blocks, scale by adjustment and 1/batch.
    @pl.when(k == pl.num_programs(0) - 1)
    def _():
        recon_sum = jnp.sum(acc_ref[...])
        labels = labels_ref[...].astype(jnp.float32)
        classes = classes_ref[...].astype(jnp.float32)
        left = jnp.maximum(m_p - classes, 0.0)
        right = jnp.maximum(classes - m_n, 0.0)
        margin = jnp.sum(labels * (left * left)
                         + lam * (1.0 - labels) * (right * right))
        out_ref[...] = jnp.full(out_ref.shape,
                                (margin + adj * recon_sum) * inv_b,
                                jnp.float32)


def capsule_loss(labels, inputs, classes, reconstructions,
                 ms=(0.9, 0.1), l=0.5, adjustment=0.0005):
    """Pallas implementation of CapsuleLoss.forward. Returns a scalar f32."""
    B = inputs.shape[0]
    D = 1
    for s in inputs.shape[1:]:
        D *= s
    inputs_flat = inputs.reshape(B, D)            # contiguous flatten: free
    recon_flat = reconstructions.reshape(B, D)    # no dtype cast: stream native

    # VMEM-budget-driven tile width (multiple of 128 lanes, capped by D
    # rounded up to a lane multiple).  2 streams x 2 pipeline buffers x block
    # + the f32 accumulator stay well under the 32 MiB scoped VMEM limit.
    itemsize = max(inputs_flat.dtype.itemsize, recon_flat.dtype.itemsize)
    td_budget = max(128, (_TARGET_BLOCK_BYTES // (B * itemsize)) // 128 * 128)
    d_up = ((D + 127) // 128) * 128
    TD = min(td_budget, d_up)
    n_tiles = -(-D // TD)
    ragged = (n_tiles * TD) != D   # last tile has out-of-bounds columns

    kernel = functools.partial(
        _capsule_loss_kernel,
        m_p=float(ms[0]), m_n=float(ms[1]), lam=float(l),
        adj=float(adjustment), inv_b=1.0 / float(B),
        d_total=D, td=TD, ragged=ragged,
    )

    out = pl.pallas_call(
        kernel,
        out_shape=jax.ShapeDtypeStruct((_OUT_SUB, _OUT_LANE), jnp.float32),
        grid_spec=pltpu.PrefetchScalarGridSpec(
            num_scalar_prefetch=0,
            grid=(n_tiles,),
            in_specs=[
                pl.BlockSpec(labels.shape, lambda k: (0, 0)),    # resident
                pl.BlockSpec(classes.shape, lambda k: (0, 0)),   # resident
                pl.BlockSpec((B, TD), lambda k: (0, k)),         # streamed
                pl.BlockSpec((B, TD), lambda k: (0, k)),         # streamed
            ],
            out_specs=pl.BlockSpec((_OUT_SUB, _OUT_LANE), lambda k: (0, 0)),
            scratch_shapes=[pltpu.VMEM((B, TD), jnp.float32)],
        ),
        compiler_params=pltpu.CompilerParams(
            dimension_semantics=("arbitrary",),
            # 2 streams x 2 buffers x ~4 MiB + <=8 MiB f32 accumulator
            # <= ~24 MiB; safe on v5e/v6e (128 MiB) and v7x (64 MiB) VMEM.
            vmem_limit_bytes=32 * 1024 * 1024,
        ),
    )(labels, classes, inputs_flat, recon_flat)

    return out[0, 0]


def _capsule_loss_ref(labels, inputs, classes, reconstructions,
                      ms=(0.9, 0.1), l=0.5, adjustment=0.0005):
    left = jnp.maximum(ms[0] - classes, 0.0) ** 2
    right = jnp.maximum(classes - ms[1], 0.0) ** 2
    margin = jnp.sum(labels * left + l * (1.0 - labels) * right)
    recon = jnp.sum((reconstructions.reshape(inputs.shape[0], -1)
                     - inputs.reshape(inputs.shape[0], -1)) ** 2)
    return (margin + adjustment * recon) / inputs.shape[0]


if __name__ == "__main__":
    key = jax.random.PRNGKey(0)
    k1, k2, k3, k4 = jax.random.split(key, 4)

    B, NUM_CLASSES = 2, 10
    C, H, W = 4, 16, 16

    # One-hot labels, capsule "class" lengths in [0, 1], images + reconstructions.
    label_ids = jax.random.randint(k1, (B,), 0, NUM_CLASSES)
    labels = jax.nn.one_hot(label_ids, NUM_CLASSES, dtype=jnp.float32)
    classes = jax.nn.sigmoid(jax.random.normal(k2, (B, NUM_CLASSES), jnp.float32))
    inputs = jax.random.normal(k3, (B, C, H, W), jnp.float32)
    reconstructions = jax.random.normal(k4, (B, C, H, W), jnp.float32)

    out = capsule_loss(labels, inputs, classes, reconstructions)
    out = jax.block_until_ready(out)

    ref = _capsule_loss_ref(labels, inputs, classes, reconstructions)
    assert jnp.allclose(out, ref, rtol=1e-5, atol=1e-5), (out, ref)

    print("KERNEL_OK")
</pallas_src>

<mosaic_0001>
module attributes {stable_mosaic.version = 11 : i64} {
  func.func @_capsule_loss_kernel(%arg0: i32, %arg1: memref<2x10xf32, #tpu.memory_space<vmem>>, %arg2: memref<2x10xf32, #tpu.memory_space<vmem>>, %arg3: memref<2x1024xf32, #tpu.memory_space<vmem>>, %arg4: memref<2x1024xf32, #tpu.memory_space<vmem>>, %arg5: memref<8x128xf32, #tpu.memory_space<vmem>>, %arg6: memref<2x1024xf32, #tpu.memory_space<vmem>>) attributes {dimension_semantics = [#tpu.dimension_semantics<arbitrary>], iteration_bounds = array<i64: 1>, scalar_prefetch = 0 : i64, scratch_operands = 1 : i64, tpu.core_type = #tpu.core_type<tc>, window_params = [{pipeline_mode = #tpu.pipeline_mode<synchronous>, transform_indices = @transform_0, window_bounds = array<i64: 2, 10>}, {pipeline_mode = #tpu.pipeline_mode<synchronous>, transform_indices = @transform_1, window_bounds = array<i64: 2, 10>}, {transform_indices = @transform_2, window_bounds = array<i64: 2, 1024>}, {transform_indices = @transform_3, window_bounds = array<i64: 2, 1024>}, {pipeline_mode = #tpu.pipeline_mode<synchronous>, transform_indices = @transform_4, window_bounds = array<i64: 8, 128>}]} {
    %c0_i32 = arith.constant 0 : i32
    %0 = arith.cmpi eq, %arg0, %c0_i32 : i32
    %1 = arith.extui %0 : i1 to i32
    %c0_i32_0 = arith.constant 0 : i32
    %2 = arith.cmpi ne, %1, %c0_i32_0 : i32
    scf.if %2 {
      %cst = arith.constant 0.000000e+00 : f32
      %13 = vector.broadcast %cst : f32 to vector<2x1024xf32>
      %c0_10 = arith.constant 0 : index
      %c0_11 = arith.constant 0 : index
      %14 = vector.load %arg6[%c0_10, %c0_11] : memref<2x1024xf32, #tpu.memory_space<vmem>>, vector<2x1024xf32>
      tpu.vector_store %arg6[%c0_10, %c0_11], %13 {strides = array<i32>} : memref<2x1024xf32, #tpu.memory_space<vmem>>, vector<2x1024xf32>,
    } else {
    }
    %c0 = arith.constant 0 : index
    %c0_1 = arith.constant 0 : index
    %3 = vector.load %arg3[%c0, %c0_1] : memref<2x1024xf32, #tpu.memory_space<vmem>>, vector<2x1024xf32>
    %c0_2 = arith.constant 0 : index
    %c0_3 = arith.constant 0 : index
    %4 = vector.load %arg4[%c0_2, %c0_3] : memref<2x1024xf32, #tpu.memory_space<vmem>>, vector<2x1024xf32>
    %5 = arith.subf %4, %3 : vector<2x1024xf32>
    %6 = arith.mulf %5, %5 : vector<2x1024xf32>
    %c0_4 = arith.constant 0 : index
    %c0_5 = arith.constant 0 : index
    %7 = vector.load %arg6[%c0_4, %c0_5] : memref<2x1024xf32, #tpu.memory_space<vmem>>, vector<2x1024xf32>
    %8 = arith.addf %7, %6 : vector<2x1024xf32>
    %c0_6 = arith.constant 0 : index
    %c0_7 = arith.constant 0 : index
    %9 = vector.load %arg6[%c0_6, %c0_7] : memref<2x1024xf32, #tpu.memory_space<vmem>>, vector<2x1024xf32>
    tpu.vector_store %arg6[%c0_6, %c0_7], %8 {strides = array<i32>} : memref<2x1024xf32, #tpu.memory_space<vmem>>, vector<2x1024xf32>,
    %c0_i32_8 = arith.constant 0 : i32
    %10 = arith.cmpi eq, %arg0, %c0_i32_8 : i32
    %11 = arith.extui %10 : i1 to i32
    %c0_i32_9 = arith.constant 0 : i32
    %12 = arith.cmpi ne, %11, %c0_i32_9 : i32
    scf.if %12 {
      %c0_10 = arith.constant 0 : index
      %c0_11 = arith.constant 0 : index
      %13 = vector.load %arg6[%c0_10, %c0_11] : memref<2x1024xf32, #tpu.memory_space<vmem>>, vector<2x1024xf32>
      %14 = vector.shape_cast %13 : vector<2x1024xf32> to vector<1x2x1024xf32>
      %cst = arith.constant dense<0.000000e+00> : vector<1xf32>
      %15 = vector.multi_reduction <add>, %14, %cst [1, 2] : vector<1x2x1024xf32> to vector<1xf32>
      %16 = vector.shape_cast %15 : vector<1xf32> to vector<1x1x1xf32>
      %17 = vector.extract %16[0, 0, 0] : f32 from vector<1x1x1xf32>
      %c0_12 = arith.constant 0 : index
      %c0_13 = arith.constant 0 : index
      %18 = vector.load %arg1[%c0_12, %c0_13] : memref<2x10xf32, #tpu.memory_space<vmem>>, vector<2x10xf32>
      %c0_14 = arith.constant 0 : index
      %c0_15 = arith.constant 0 : index
      %19 = vector.load %arg2[%c0_14, %c0_15] : memref<2x10xf32, #tpu.memory_space<vmem>>, vector<2x10xf32>
      %cst_16 = arith.constant 0.899999976 : f32
      %20 = vector.broadcast %cst_16 : f32 to vector<2x10xf32>
      %21 = arith.subf %20, %19 : vector<2x10xf32>
      %cst_17 = arith.constant 0.000000e+00 : f32
      %22 = vector.broadcast %cst_17 : f32 to vector<2x10xf32>
      %23 = arith.maximumf %21, %22 : vector<2x10xf32>
      %cst_18 = arith.constant 1.000000e-01 : f32
      %24 = vector.broadcast %cst_18 : f32 to vector<2x10xf32>
      %25 = arith.subf %19, %24 : vector<2x10xf32>
      %cst_19 = arith.constant 0.000000e+00 : f32
      %26 = vector.broadcast %cst_19 : f32 to vector<2x10xf32>
      %27 = arith.maximumf %25, %26 : vector<2x10xf32>
      %28 = arith.mulf %23, %23 : vector<2x10xf32>
      %29 = arith.mulf %18, %28 : vector<2x10xf32>
      %cst_20 = arith.constant 1.000000e+00 : f32
      %30 = vector.broadcast %cst_20 : f32 to vector<2x10xf32>
      %31 = arith.subf %30, %18 : vector<2x10xf32>
      %cst_21 = arith.constant 5.000000e-01 : f32
      %32 = vector.broadcast %cst_21 : f32 to vector<2x10xf32>
      %33 = arith.mulf %32, %31 : vector<2x10xf32>
      %34 = arith.mulf %27, %27 : vector<2x10xf32>
      %35 = arith.mulf %33, %34 : vector<2x10xf32>
      %36 = arith.addf %29, %35 : vector<2x10xf32>
      %37 = vector.shape_cast %36 : vector<2x10xf32> to vector<1x2x10xf32>
      %cst_22 = arith.constant dense<0.000000e+00> : vector<1xf32>
      %38 = vector.multi_reduction <add>, %37, %cst_22 [1, 2] : vector<1x2x10xf32> to vector<1xf32>
      %39 = vector.shape_cast %38 : vector<1xf32> to vector<1x1x1xf32>
      %40 = vector.extract %39[0, 0, 0] : f32 from vector<1x1x1xf32>
      %cst_23 = arith.constant 5.000000e-04 : f32
      %41 = arith.mulf %cst_23, %17 : f32
      %42 = arith.addf %40, %41 : f32
      %cst_24 = arith.constant 5.000000e-01 : f32
      %43 = arith.mulf %42, %cst_24 : f32
      %44 = vector.broadcast %43 : f32 to vector<8x128xf32>
      %c0_25 = arith.constant 0 : index
      %c0_26 = arith.constant 0 : index
      %45 = vector.load %arg5[%c0_25, %c0_26] : memref<8x128xf32, #tpu.memory_space<vmem>>, vector<8x128xf32>
      tpu.vector_store %arg5[%c0_25, %c0_26], %44 {strides = array<i32>} : memref<8x128xf32, #tpu.memory_space<vmem>>, vector<8x128xf32>,
    } else {
    }
    return
  }
  func.func @transform_0(%arg0: i32) -> (i32, i32) {
    %c0_i32 = arith.constant 0 : i32
    %c0_i32_0 = arith.constant 0 : i32
    %c0_i32_1 = arith.constant 0 : i32
    return %c0_i32, %c0_i32_0 : i32, i32
  }
  func.func @transform_1(%arg0: i32) -> (i32, i32) {
    %c0_i32 = arith.constant 0 : i32
    %c0_i32_0 = arith.constant 0 : i32
    %c0_i32_1 = arith.constant 0 : i32
    return %c0_i32, %c0_i32_0 : i32, i32
  }
  func.func @transform_2(%arg0: i32) -> (i32, i32) {
    %c0_i32 = arith.constant 0 : i32
    %c0_i32_0 = arith.constant 0 : i32
    return %c0_i32, %arg0 : i32, i32
  }
  func.func @transform_3(%arg0: i32) -> (i32, i32) {
    %c0_i32 = arith.constant 0 : i32
    %c0_i32_0 = arith.constant 0 : i32
    return %c0_i32, %arg0 : i32, i32
  }
  func.func @transform_4(%arg0: i32) -> (i32, i32) {
    %c0_i32 = arith.constant 0 : i32
    %c0_i32_0 = arith.constant 0 : i32
    %c0_i32_1 = arith.constant 0 : i32
    return %c0_i32, %c0_i32_0 : i32, i32
  }
}

</mosaic_0001>

<llo_original>
// kernel: tpu_custom_call.1
$region0: #{tpu_custom_call.1}
  #allocation0 [shape = 'u32[]', space=smem, size = 0x4, offset = 0x4, fixed_abs, tag = 'smem constant byte address 0x4 - core index']
  #allocation1 [shape = 'u32[72,128]{1,0:T(1,128)}', space=vmem, size = 0x9000, scoped, tag = 'internal scratch']
  #allocation2 [shape = 'f32[2,1024]{1,0:T(2,128)}', space=vmem, size = 0x2000, scoped, tag = 'scratch operand']
  %s0 = inlined_call_operand.hbm [shape: f32[2,10], index: 0, kind: input, shape index: {}]
  %s1 = inlined_call_operand.hbm [shape: f32[2,10], index: 1, kind: input, shape index: {}]
  %s2 = inlined_call_operand.hbm [shape: f32[2,1024], index: 2, kind: input, shape index: {}]
  %s3 = inlined_call_operand.hbm [shape: f32[2,1024], index: 3, kind: input, shape index: {}]
  %s4 = inlined_call_operand.hbm [shape: f32[8,128], index: 4, kind: output, shape index: {}]
  %s5 = sld [smem:[#allocation0]]
  $region50: #{tpu_custom_call.1} parent=0
    _
  %s7 = ssub.s32 1, %s5
  %s8 = scalar_select 0, %s7, %s5
  $region1: #{tpu_custom_call.1} parent=0
    #allocation3 [shape = 'u8[1024]{0}', space=vmem, size = 0x400, scoped, tag = 'input window, operand 0, single buffered']
    #allocation4 [shape = 's32[1]{0}', space=sflag, size = 0x4, scoped, tag = 'scoped memory for tpu_custom_call.1']
    #allocation5 [shape = 's32[1]{0}', space=sflag, size = 0x4, scoped, tag = 'scoped memory for tpu_custom_call.1']
    #allocation6 [shape = 'u8[1024]{0}', space=vmem, size = 0x400, scoped, tag = 'input window, operand 1, single buffered']
    #allocation7 [shape = 's32[1]{0}', space=sflag, size = 0x4, scoped, tag = 'scoped memory for tpu_custom_call.1']
    #allocation8 [shape = 'u8[8192]{0}', space=vmem, size = 0x2000, scoped, tag = 'input window, operand 2, single buffered']
    #allocation9 [shape = 'u8[8192]{0}', space=vmem, size = 0x2000, scoped, tag = 'input window, operand 3, single buffered']
    #allocation10 [shape = 's32[1]{0}', space=sflag, size = 0x4, scoped, tag = 'scoped memory for tpu_custom_call.1']
    #allocation11 [shape = 'u8[4096]{0}', space=vmem, size = 0x1000, scoped, tag = 'output window, operand 0, single buffered']
    %9 = vsyncpa [#allocation4], 0
    %10 = vsyncpa [#allocation7], 0
    %11 = vsyncpa [#allocation10], 0
    %12 = vsyncpa [#allocation5], 0
    // Predicated region
    $region2: #{tpu_custom_call.1} parent=1 // pred_check
      _
    $region3: #{tpu_custom_call.1} parent=1 // pred_check_branch
      %14 = sbr.rel (0) target = $region5
    $region4: #{tpu_custom_call.1} parent=1 // pred_region
      %16 = vsyncadd [#allocation4], 0
      %s18 = sshll.u32 %s0, 4
      %s19 = int_to_ptr.hbm [resolvable:$true] %s18
      %s20 = sshll.u32 [#allocation3], 4
      %s21 = int_to_ptr.vmem [resolvable:$true] %s20
      %23 = dma.hbm_to_vmem [thread:$0]  %s19, 32, %s21, [#allocation4]
    $region5: #{tpu_custom_call.1} parent=1 // pred_fallthru
      _
    // Predicated region
    $region6: #{tpu_custom_call.1} parent=1 // pred_check
      _
    $region7: #{tpu_custom_call.1} parent=1 // pred_check_branch
      %25 = sbr.rel (0) target = $region9
    $region8: #{tpu_custom_call.1} parent=1 // pred_region
      %27 = vsyncadd [#allocation7], 0
      %s29 = sshll.u32 %s1, 4
      %s30 = int_to_ptr.hbm [resolvable:$true] %s29
      %s31 = sshll.u32 [#allocation6], 4
      %s32 = int_to_ptr.vmem [resolvable:$true] %s31
      %34 = dma.hbm_to_vmem [thread:$0]  %s30, 32, %s32, [#allocation7]
    $region9: #{tpu_custom_call.1} parent=1 // pred_fallthru
      _
    // Predicated region
    $region10: #{tpu_custom_call.1} parent=1 // pred_check
      _
    $region11: #{tpu_custom_call.1} parent=1 // pred_check_branch
      %36 = sbr.rel (0) target = $region13
    $region12: #{tpu_custom_call.1} parent=1 // pred_region
      %38 = vsyncadd [#allocation7], 0
      %s40 = sshll.u32 %s2, 4
      %s41 = int_to_ptr.hbm [resolvable:$true] %s40
      %s42 = sshll.u32 [#allocation8], 4
      %s43 = int_to_ptr.vmem [resolvable:$true] %s42
      %45 = dma.hbm_to_vmem [thread:$0]  %s41, 256, %s43, [#allocation7]
    $region13: #{tpu_custom_call.1} parent=1 // pred_fallthru
      _
    // Predicated region
    $region14: #{tpu_custom_call.1} parent=1 // pred_check
      _
    $region15: #{tpu_custom_call.1} parent=1 // pred_check_branch
      %47 = sbr.rel (0) target = $region17
    $region16: #{tpu_custom_call.1} parent=1 // pred_region
      %49 = vsyncadd [#allocation10], 0
      %s51 = sshll.u32 %s3, 4
      %s52 = int_to_ptr.hbm [resolvable:$true] %s51
      %s53 = sshll.u32 [#allocation9], 4
      %s54 = int_to_ptr.vmem [resolvable:$true] %s53
      %56 = dma.hbm_to_vmem [thread:$0]  %s52, 256, %s54, [#allocation10]
    $region17: #{tpu_custom_call.1} parent=1 // pred_fallthru
      _
    // Predicated region
    $region18: #{tpu_custom_call.1} parent=1 // pred_check
      _
    $region19: #{tpu_custom_call.1} parent=1 // pred_check_branch
      %58 = sbr.rel (0) target = $region21
    $region20: #{tpu_custom_call.1} parent=1 // pred_region
      %60 = dma.done [#allocation4], 32
    $region21: #{tpu_custom_call.1} parent=1 // pred_fallthru
      _
    // Predicated region
    $region22: #{tpu_custom_call.1} parent=1 // pred_check
      _
    $region23: #{tpu_custom_call.1} parent=1 // pred_check_branch
      %62 = sbr.rel (0) target = $region25
    $region24: #{tpu_custom_call.1} parent=1 // pred_region
      %64 = dma.done [#allocation7], 32
    $region25: #{tpu_custom_call.1} parent=1 // pred_fallthru
      _
    // Predicated region
    $region26: #{tpu_custom_call.1} parent=1 // pred_check
      _
    $region27: #{tpu_custom_call.1} parent=1 // pred_check_branch
      %66 = sbr.rel (0) target = $region29
    $region28: #{tpu_custom_call.1} parent=1 // pred_region
      %68 = dma.done [#allocation7], 256
    $region29: #{tpu_custom_call.1} parent=1 // pred_fallthru
      _
    // Predicated region
    $region30: #{tpu_custom_call.1} parent=1 // pred_check
      _
    $region31: #{tpu_custom_call.1} parent=1 // pred_check_branch
      %70 = sbr.rel (0) target = $region33
    $region32: #{tpu_custom_call.1} parent=1 // pred_region
      %72 = dma.done [#allocation10], 256
    $region33: #{tpu_custom_call.1} parent=1 // pred_fallthru
      _
    %p73 = scmp.eq.s32.totalorder 0, 0
    // Predicated region
    $region34: #{tpu_custom_call.1} parent=1 // pred_check
      %p74 = pneg %p73
    $region35: #{tpu_custom_call.1} parent=1 // pred_check_branch
      %76 = sbr.rel (%p74) target = $region37
    $region36: #{tpu_custom_call.1} parent=1 // pred_region
      %77 = vst [vmem:[#allocation2] sm:$0xff] 0.0
      %78 = vst [vmem:[#allocation2 + $0x8] sm:$0xff] 0.0
    $region37: #{tpu_custom_call.1} parent=1 // pred_fallthru
      _
    %v79 = vld [vmem:[#allocation8] sm:$0xff]
    %v80 = vld [vmem:[#allocation8 + $0x8] sm:$0xff]
    %v81 = vld [vmem:[#allocation9] sm:$0xff]
    %v82 = vld [vmem:[#allocation9 + $0x8] sm:$0xff]
    %v83 = vsub.f32 %v81, %v79
    %v84 = vsub.f32 %v82, %v80
    %v85 = vmul.f32 %v83, %v83
    %v86 = vmul.f32 %v84, %v84
    %v87 = vld [vmem:[#allocation2] sm:$0xff]
    %v88 = vld [vmem:[#allocation2 + $0x8] sm:$0xff]
    %v89 = vadd.f32 %v87, %v85
    %v90 = vadd.f32 %v88, %v86
    %91 = vst [vmem:[#allocation2] sm:$0xff] %v89
    %92 = vst [vmem:[#allocation2 + $0x8] sm:$0xff] %v90
    // Predicated region
    $region38: #{tpu_custom_call.1} parent=1 // pred_check
      %p93 = pneg %p73
    $region39: #{tpu_custom_call.1} parent=1 // pred_check_branch
      %95 = sbr.rel (%p93) target = $region41
    $region40: #{tpu_custom_call.1} parent=1 // pred_region
      %v96 = vld [vmem:[#allocation2] sm:$0xff]
      %v97 = vld [vmem:[#allocation2 + $0x8] sm:$0xff]
      %100 = vst [vmem:[#allocation1] ss:$4 sm:$0xff] %v96
      %s101 = scalar_lea.vmem [#allocation1], 32
      %102 = vst [vmem:[%s101] ss:$4 sm:$0xff] %v97
      %v103 = vld.sshfl [vmem:[#allocation1] sm:$0xff pattern:$0x73625140]
      %v104 = vld.sshfl [vmem:[#allocation1 + $0x8] sm:$0xff pattern:$0x73625140]
      %v105 = vld.sshfl [vmem:[#allocation1 + $0x10] sm:$0xff pattern:$0x73625140]
      %v106 = vld.sshfl [vmem:[#allocation1 + $0x18] sm:$0xff pattern:$0x73625140]
      %v107 = vld.sshfl [vmem:[#allocation1 + $0x20] sm:$0xff pattern:$0x73625140]
      %v108 = vld.sshfl [vmem:[#allocation1 + $0x28] sm:$0xff pattern:$0x73625140]
      %v109 = vld.sshfl [vmem:[#allocation1 + $0x30] sm:$0xff pattern:$0x73625140]
      %v110 = vld.sshfl [vmem:[#allocation1 + $0x38] sm:$0xff pattern:$0x73625140]
      %vm119 = vcmask 1041408
      %v120 = vsel %vm119, %v103, 0.0
      %v121 = vsel %vm119, %v104, 0.0
      %v122 = vadd.f32 %v120, %v121
      %v123 = vsel %vm119, %v105, 0.0
      %v124 = vadd.f32 %v122, %v123
      %v125 = vsel %vm119, %v106, 0.0
      %v126 = vadd.f32 %v124, %v125
      %v127 = vsel %vm119, %v107, 0.0
      %v128 = vadd.f32 %v126, %v127
      %v129 = vsel %vm119, %v108, 0.0
      %v130 = vadd.f32 %v128, %v129
      %v131 = vsel %vm119, %v109, 0.0
      %v132 = vadd.f32 %v130, %v131
      %v133 = vsel %vm119, %v110, 0.0
      %v134 = vadd.f32 %v132, %v133
      %135 = vadd.xlane.f32.xlu0 %v134
      %v136 = vpop.xlane.xlu0 %135
      %v137 = vrot.slane %v136, 4
      %v138 = vadd.f32 %v136, %v137
      %v139 = vrot.slane %v138, 2
      %v140 = vadd.f32 %v138, %v139
      %v141 = vrot.slane %v140, 1
      %v142 = vadd.f32 %v140, %v141
      %s143 = vtos %v142
      %v144 = vld [vmem:[#allocation3] sm:$0x3]
      %v145 = vld [vmem:[#allocation6] sm:$0x3]
      %v146 = vsub.f32 0.9, %v145
      %v147 = vmax.f32 %v146, 0.0
      %v148 = vsub.f32 %v145, 0.1
      %v149 = vmax.f32 %v148, 0.0
      %v150 = vmul.f32 %v147, %v147
      %v151 = vmul.f32 %v144, %v150
      %v152 = vsub.f32 1.0, %v144
      %v153 = vmul.f32 %v152, 0.5
      %v154 = vmul.f32 %v149, %v149
      %v155 = vmul.f32 %v153, %v154
      %v156 = vadd.f32 %v151, %v155
      %vm157 = vcmask 74752
      %v158 = vsel %vm157, %v156, 0.0
      %159 = vadd.xlane.f32.xlu0 %v158
      %v160 = vpop.xlane.xlu0 %159
      %v161 = vrot.slane %v160, 4
      %v162 = vadd.f32 %v160, %v161
      %v163 = vrot.slane %v162, 2
      %v164 = vadd.f32 %v162, %v163
      %v165 = vrot.slane %v164, 1
      %v166 = vadd.f32 %v164, %v165
      %s167 = vtos %v166
      %s168 = smul.f32 %s143, 0.0005
      %s169 = sadd.f32 %s167, %s168
      %s170 = smul.f32 %s169, 0.5
      %v171 = vstv %s170
      %172 = vst [vmem:[#allocation11] sm:$0xff] %v171
    $region41: #{tpu_custom_call.1} parent=1 // pred_fallthru
      _
    // Predicated region
    $region42: #{tpu_custom_call.1} parent=1 // pred_check
      _
    $region43: #{tpu_custom_call.1} parent=1 // pred_check_branch
      %174 = sbr.rel (0) target = $region45
    $region44: #{tpu_custom_call.1} parent=1 // pred_region
      %176 = vsyncadd [#allocation5], 0
      %s178 = sshll.u32 [#allocation11], 4
      %s179 = int_to_ptr.vmem [resolvable:$true] %s178
      %s180 = sshll.u32 %s4, 4
      %s181 = int_to_ptr.hbm [resolvable:$true] %s180
      %183 = dma.vmem_to_hbm [thread:$0]  %s179, 128, %s181, [#allocation5]
    $region45: #{tpu_custom_call.1} parent=1 // pred_fallthru
      _
    // Predicated region
    $region46: #{tpu_custom_call.1} parent=1 // pred_check
      _
    $region47: #{tpu_custom_call.1} parent=1 // pred_check_branch
      %185 = sbr.rel (0) target = $region49
    $region48: #{tpu_custom_call.1} parent=1 // pred_region
      %187 = dma.done [#allocation5], 128
    $region49: #{tpu_custom_call.1} parent=1 // pred_fallthru
      _
    %188 = vsyncpa [#allocation4], 1
    %189 = vsyncpa [#allocation7], 1
    %190 = vsyncpa [#allocation10], 1
    %191 = vsyncpa [#allocation5], 1

</llo_original>
